<compile_context>
chip_gen: v6e
topology: v6e:2x2x1
jax: 0.10.0
libtpu: 0.0.40
codegen_flags: <defaults>
</compile_context>

<pallas_src>
import jax
import jax.numpy as jnp
from jax.experimental import pallas as pl
from jax.experimental.pallas import tpu as pltpu

F_IN = 244
F_OUT = 64
LN_EPS = 1e-5


def _round_up(n, m):
    return ((n + m - 1) // m) * m


def _libs_kernel(x_ref, gamma_ref, beta_ref, w_ref, b_ref, o_ref):
    # x_ref : (bm, 2*F_IN)  -- packed: row r = original batch rows (2r, 2r+1)
    # gamma/beta: (1, F_IN); w: (F_IN, F_OUT); b: (1, F_OUT)
    # o_ref : (bm, 2*F_OUT) -- row r = outputs for original rows (2r, 2r+1)
    xr = x_ref[...]
    if xr.dtype != jnp.float32:          # allow bf16 inputs; LN stats in f32
        xr = xr.astype(jnp.float32)
    gamma = gamma_ref[...]
    beta = beta_ref[...]
    w = w_ref[...]
    b = b_ref[...]

    def ln_linear_relu(x):
        # LayerNorm over features: biased variance, eps inside rsqrt
        # (matches torch.nn.LayerNorm), then Linear on the MXU, then ReLU.
        mean = jnp.mean(x, axis=-1, keepdims=True)
        c = x - mean
        var = jnp.mean(c * c, axis=-1, keepdims=True)
        xn = c * jax.lax.rsqrt(var + LN_EPS) * gamma + beta
        lhs = xn if xn.dtype == w.dtype else xn.astype(w.dtype)
        y = jnp.dot(lhs, w, preferred_element_type=jnp.float32)
        return jnp.maximum(y + b, 0.0)

    y_even = ln_linear_relu(xr[:, :F_IN])        # even original rows
    y_odd = ln_linear_relu(xr[:, F_IN:])         # odd original rows
    out = jnp.concatenate([y_even, y_odd], axis=-1)   # (bm, 128), lane-dense
    o_ref[...] = out.astype(o_ref.dtype)


def libs_feature_extractor(x, gamma, beta, w_t, b, *, block_b=1024):
    """Fused LayerNorm(244) -> Linear(244,64) -> ReLU.

    x: (B, 244) f32/bf16; w_t: (244, 64) (torch weight transposed);
    gamma/beta: (244,); b: (64,). Returns (B, 64) in x.dtype.
    """
    B0, F = x.shape
    assert F == F_IN
    block_b = max(int(block_b), 16)

    # Pad to an even batch so pairs of rows pack into one 128-lane output row.
    B = B0 + (B0 % 2)
    if B != B0:
        x = jnp.pad(x, ((0, B - B0), (0, 0)))
    R = B // 2  # packed rows

    # Contiguous row-major reshapes: pure metadata, no HBM copy.
    x2 = x.reshape(R, 2 * F_IN)
    gamma2 = gamma.reshape(1, F_IN)
    beta2 = beta.reshape(1, F_IN)
    b2 = b.reshape(1, F_OUT)

    # Tile size in packed rows (= block_b // 2 original batch rows).
    bm = min(block_b // 2, _round_up(R, 8))
    bm = max(8, _round_up(bm, 8))
    # Give v7x's two TensorCores >= 2 grid steps to split when possible.
    if pl.cdiv(R, bm) < 2 and R > 8:
        bm = max(8, _round_up(pl.cdiv(R, 2), 8))
    grid = (pl.cdiv(R, bm),)

    # Scoped-VMEM limit: only raise it when big tiles need it; stay well
    # under v7x's 64 MiB physical VMEM.
    itemsize = jnp.dtype(x.dtype).itemsize
    x_tile = bm * 2 * F_IN * itemsize
    o_tile = bm * 2 * F_OUT * itemsize
    params = (2 * F_IN + F_IN * F_OUT + F_OUT) * 4
    est = 2 * (x_tile + o_tile) + 2 * params + (1 << 20)
    cp_kwargs = dict(dimension_semantics=("parallel",))
    if est > (12 << 20):
        cp_kwargs["vmem_limit_bytes"] = int(min(2 * est, 48 << 20))

    out2 = pl.pallas_call(
        _libs_kernel,
        out_shape=jax.ShapeDtypeStruct((R, 2 * F_OUT), x.dtype),
        grid_spec=pltpu.PrefetchScalarGridSpec(
            num_scalar_prefetch=0,
            grid=grid,
            in_specs=[
                pl.BlockSpec((bm, 2 * F_IN), lambda i: (i, 0)),   # packed x
                pl.BlockSpec((1, F_IN), lambda i: (0, 0)),        # gamma
                pl.BlockSpec((1, F_IN), lambda i: (0, 0)),        # beta
                pl.BlockSpec((F_IN, F_OUT), lambda i: (0, 0)),    # W^T
                pl.BlockSpec((1, F_OUT), lambda i: (0, 0)),       # bias
            ],
            out_specs=pl.BlockSpec((bm, 2 * F_OUT), lambda i: (i, 0)),
        ),
        compiler_params=pltpu.CompilerParams(**cp_kwargs),
    )(x2, gamma2, beta2, w_t, b2)

    # Free reshape back to (B, 64); drop the pad row if the batch was odd.
    out = out2.reshape(B, F_OUT)
    return out[:B0] if B != B0 else out


def reference(x, gamma, beta, w_t, b):
    x = x.astype(jnp.float32)
    mean = jnp.mean(x, axis=-1, keepdims=True)
    var = jnp.mean((x - mean) ** 2, axis=-1, keepdims=True)
    xn = (x - mean) / jnp.sqrt(var + LN_EPS) * gamma + beta
    return jnp.maximum(xn @ w_t + b, 0.0)


if __name__ == "__main__":
    key = jax.random.PRNGKey(0)
    k_x1, k_x2, k_w, k_b = jax.random.split(key, 4)

    # Deterministic parameters (PyTorch-like init: LN gamma=1/beta=0,
    # Linear weight/bias ~ U(-1/sqrt(fan_in), 1/sqrt(fan_in))).
    gamma = jnp.ones((F_IN,), dtype=jnp.float32)
    beta = jnp.zeros((F_IN,), dtype=jnp.float32)
    bound = 1.0 / jnp.sqrt(jnp.float32(F_IN))
    w = jax.random.uniform(k_w, (F_OUT, F_IN), dtype=jnp.float32,
                           minval=-bound, maxval=bound)
    b = jax.random.uniform(k_b, (F_OUT,), dtype=jnp.float32,
                           minval=-bound, maxval=bound)
    w_t = w.T  # (244, 64)

    # Case 1: small batch, single grid step.
    B1 = 16
    x1 = jax.random.normal(k_x1, (B1, F_IN), dtype=jnp.float32)
    out1 = jax.block_until_ready(libs_feature_extractor(x1, gamma, beta, w_t, b))
    ref1 = reference(x1, gamma, beta, w_t, b)
    assert out1.shape == (B1, F_OUT)
    assert jnp.allclose(out1, ref1, atol=1e-4, rtol=1e-4), "mismatch (B=16)"

    # Case 2: multi-step grid with a partial trailing block.
    B2 = 48
    x2 = jax.random.normal(k_x2, (B2, F_IN), dtype=jnp.float32)
    out2 = jax.block_until_ready(libs_feature_extractor(x2, gamma, beta, w_t, b))
    ref2 = reference(x2, gamma, beta, w_t, b)
    assert out2.shape == (B2, F_OUT)
    assert jnp.allclose(out2, ref2, atol=1e-4, rtol=1e-4), "mismatch (B=48)"

    print("KERNEL_OK")
</pallas_src>

<mosaic_0001>
module attributes {stable_mosaic.version = 11 : i64} {
  func.func @_libs_kernel(%arg0: i32, %arg1: memref<8x488xf32, #tpu.memory_space<vmem>>, %arg2: memref<1x244xf32, #tpu.memory_space<vmem>>, %arg3: memref<1x244xf32, #tpu.memory_space<vmem>>, %arg4: memref<244x64xf32, #tpu.memory_space<vmem>>, %arg5: memref<1x64xf32, #tpu.memory_space<vmem>>, %arg6: memref<8x128xf32, #tpu.memory_space<vmem>>) attributes {dimension_semantics = [#tpu.dimension_semantics<parallel>], iteration_bounds = array<i64: 1>, scalar_prefetch = 0 : i64, scratch_operands = 0 : i64, tpu.core_type = #tpu.core_type<tc>, window_params = [{transform_indices = @transform_0, window_bounds = array<i64: 8, 488>}, {pipeline_mode = #tpu.pipeline_mode<synchronous>, transform_indices = @transform_1, window_bounds = array<i64: 1, 244>}, {pipeline_mode = #tpu.pipeline_mode<synchronous>, transform_indices = @transform_2, window_bounds = array<i64: 1, 244>}, {pipeline_mode = #tpu.pipeline_mode<synchronous>, transform_indices = @transform_3, window_bounds = array<i64: 244, 64>}, {pipeline_mode = #tpu.pipeline_mode<synchronous>, transform_indices = @transform_4, window_bounds = array<i64: 1, 64>}, {transform_indices = @transform_5, window_bounds = array<i64: 8, 128>}]} {
    %c0 = arith.constant 0 : index
    %c0_0 = arith.constant 0 : index
    %0 = vector.load %arg1[%c0, %c0_0] : memref<8x488xf32, #tpu.memory_space<vmem>>, vector<8x488xf32>
    %c0_1 = arith.constant 0 : index
    %c0_2 = arith.constant 0 : index
    %1 = vector.load %arg2[%c0_1, %c0_2] : memref<1x244xf32, #tpu.memory_space<vmem>>, vector<1x244xf32>
    %c0_3 = arith.constant 0 : index
    %c0_4 = arith.constant 0 : index
    %2 = vector.load %arg3[%c0_3, %c0_4] : memref<1x244xf32, #tpu.memory_space<vmem>>, vector<1x244xf32>
    %c0_5 = arith.constant 0 : index
    %c0_6 = arith.constant 0 : index
    %3 = vector.load %arg4[%c0_5, %c0_6] : memref<244x64xf32, #tpu.memory_space<vmem>>, vector<244x64xf32>
    %c0_7 = arith.constant 0 : index
    %c0_8 = arith.constant 0 : index
    %4 = vector.load %arg5[%c0_7, %c0_8] : memref<1x64xf32, #tpu.memory_space<vmem>>, vector<1x64xf32>
    %5 = vector.extract_strided_slice %0 {offsets = [0, 0], sizes = [8, 244], strides = [1, 1]} : vector<8x488xf32> to vector<8x244xf32>
    %cst = arith.constant dense<0.000000e+00> : vector<8xf32>
    %6 = vector.multi_reduction <add>, %5, %cst [1] : vector<8x244xf32> to vector<8xf32>
    %7 = vector.shape_cast %6 : vector<8xf32> to vector<8x1xf32>
    %cst_9 = arith.constant 2.440000e+02 : f32
    %8 = vector.broadcast %cst_9 : f32 to vector<8x1xf32>
    %9 = arith.divf %7, %8 : vector<8x1xf32>
    %10 = vector.broadcast %9 : vector<8x1xf32> to vector<8x244xf32>
    %11 = arith.subf %5, %10 : vector<8x244xf32>
    %12 = arith.mulf %11, %11 : vector<8x244xf32>
    %cst_10 = arith.constant dense<0.000000e+00> : vector<8xf32>
    %13 = vector.multi_reduction <add>, %12, %cst_10 [1] : vector<8x244xf32> to vector<8xf32>
    %14 = vector.shape_cast %13 : vector<8xf32> to vector<8x1xf32>
    %cst_11 = arith.constant 2.440000e+02 : f32
    %15 = vector.broadcast %cst_11 : f32 to vector<8x1xf32>
    %16 = arith.divf %14, %15 : vector<8x1xf32>
    %cst_12 = arith.constant 9.99999974E-6 : f32
    %17 = vector.broadcast %cst_12 : f32 to vector<8x1xf32>
    %18 = arith.addf %16, %17 : vector<8x1xf32>
    %19 = math.rsqrt %18 : vector<8x1xf32>
    %20 = vector.broadcast %19 : vector<8x1xf32> to vector<8x244xf32>
    %21 = arith.mulf %11, %20 : vector<8x244xf32>
    %22 = vector.broadcast %1 : vector<1x244xf32> to vector<8x244xf32>
    %23 = arith.mulf %21, %22 : vector<8x244xf32>
    %24 = vector.broadcast %2 : vector<1x244xf32> to vector<8x244xf32>
    %25 = arith.addf %23, %24 : vector<8x244xf32>
    %cst_13 = arith.constant dense<0.000000e+00> : vector<8x64xf32>
    %26 = tpu.matmul %25, %3, %cst_13 {dimension_numbers = #tpu.dot_dimension_numbers<[1], [0], [0], [1], [0, 0, 1, 1], [], []>} : vector<8x244xf32>, vector<244x64xf32>, vector<8x64xf32> -> vector<8x64xf32>
    %27 = vector.broadcast %4 : vector<1x64xf32> to vector<8x64xf32>
    %28 = arith.addf %26, %27 : vector<8x64xf32>
    %cst_14 = arith.constant 0.000000e+00 : f32
    %29 = vector.broadcast %cst_14 : f32 to vector<8x64xf32>
    %30 = arith.maximumf %28, %29 : vector<8x64xf32>
    %31 = vector.extract_strided_slice %0 {offsets = [0, 244], sizes = [8, 244], strides = [1, 1]} : vector<8x488xf32> to vector<8x244xf32>
    %cst_15 = arith.constant dense<0.000000e+00> : vector<8xf32>
    %32 = vector.multi_reduction <add>, %31, %cst_15 [1] : vector<8x244xf32> to vector<8xf32>
    %33 = vector.shape_cast %32 : vector<8xf32> to vector<8x1xf32>
    %cst_16 = arith.constant 2.440000e+02 : f32
    %34 = vector.broadcast %cst_16 : f32 to vector<8x1xf32>
    %35 = arith.divf %33, %34 : vector<8x1xf32>
    %36 = vector.broadcast %35 : vector<8x1xf32> to vector<8x244xf32>
    %37 = arith.subf %31, %36 : vector<8x244xf32>
    %38 = arith.mulf %37, %37 : vector<8x244xf32>
    %cst_17 = arith.constant dense<0.000000e+00> : vector<8xf32>
    %39 = vector.multi_reduction <add>, %38, %cst_17 [1] : vector<8x244xf32> to vector<8xf32>
    %40 = vector.shape_cast %39 : vector<8xf32> to vector<8x1xf32>
    %cst_18 = arith.constant 2.440000e+02 : f32
    %41 = vector.broadcast %cst_18 : f32 to vector<8x1xf32>
    %42 = arith.divf %40, %41 : vector<8x1xf32>
    %cst_19 = arith.constant 9.99999974E-6 : f32
    %43 = vector.broadcast %cst_19 : f32 to vector<8x1xf32>
    %44 = arith.addf %42, %43 : vector<8x1xf32>
    %45 = math.rsqrt %44 : vector<8x1xf32>
    %46 = vector.broadcast %45 : vector<8x1xf32> to vector<8x244xf32>
    %47 = arith.mulf %37, %46 : vector<8x244xf32>
    %48 = vector.broadcast %1 : vector<1x244xf32> to vector<8x244xf32>
    %49 = arith.mulf %47, %48 : vector<8x244xf32>
    %50 = vector.broadcast %2 : vector<1x244xf32> to vector<8x244xf32>
    %51 = arith.addf %49, %50 : vector<8x244xf32>
    %cst_20 = arith.constant dense<0.000000e+00> : vector<8x64xf32>
    %52 = tpu.matmul %51, %3, %cst_20 {dimension_numbers = #tpu.dot_dimension_numbers<[1], [0], [0], [1], [0, 0, 1, 1], [], []>} : vector<8x244xf32>, vector<244x64xf32>, vector<8x64xf32> -> vector<8x64xf32>
    %53 = vector.broadcast %4 : vector<1x64xf32> to vector<8x64xf32>
    %54 = arith.addf %52, %53 : vector<8x64xf32>
    %cst_21 = arith.constant 0.000000e+00 : f32
    %55 = vector.broadcast %cst_21 : f32 to vector<8x64xf32>
    %56 = arith.maximumf %54, %55 : vector<8x64xf32>
    %57 = tpu.concatenate %30, %56 in 1 : vector<8x64xf32>, vector<8x64xf32> -> vector<8x128xf32>
    %c0_22 = arith.constant 0 : index
    %c0_23 = arith.constant 0 : index
    %58 = vector.load %arg6[%c0_22, %c0_23] : memref<8x128xf32, #tpu.memory_space<vmem>>, vector<8x128xf32>
    tpu.vector_store %arg6[%c0_22, %c0_23], %57 {strides = array<i32>} : memref<8x128xf32, #tpu.memory_space<vmem>>, vector<8x128xf32>,
    return
  }
  func.func @transform_0(%arg0: i32) -> (i32, i32) {
    %c0_i32 = arith.constant 0 : i32
    %c0_i32_0 = arith.constant 0 : i32
    return %arg0, %c0_i32 : i32, i32
  }
  func.func @transform_1(%arg0: i32) -> (i32, i32) {
    %c0_i32 = arith.constant 0 : i32
    %c0_i32_0 = arith.constant 0 : i32
    %c0_i32_1 = arith.constant 0 : i32
    return %c0_i32, %c0_i32_0 : i32, i32
  }
  func.func @transform_2(%arg0: i32) -> (i32, i32) {
    %c0_i32 = arith.constant 0 : i32
    %c0_i32_0 = arith.constant 0 : i32
    %c0_i32_1 = arith.constant 0 : i32
    return %c0_i32, %c0_i32_0 : i32, i32
  }
  func.func @transform_3(%arg0: i32) -> (i32, i32) {
    %c0_i32 = arith.constant 0 : i32
    %c0_i32_0 = arith.constant 0 : i32
    %c0_i32_1 = arith.constant 0 : i32
    return %c0_i32, %c0_i32_0 : i32, i32
  }
  func.func @transform_4(%arg0: i32) -> (i32, i32) {
    %c0_i32 = arith.constant 0 : i32
    %c0_i32_0 = arith.constant 0 : i32
    %c0_i32_1 = arith.constant 0 : i32
    return %c0_i32, %c0_i32_0 : i32, i32
  }
  func.func @transform_5(%arg0: i32) -> (i32, i32) {
    %c0_i32 = arith.constant 0 : i32
    %c0_i32_0 = arith.constant 0 : i32
    return %arg0, %c0_i32 : i32, i32
  }
}

</mosaic_0001>

<llo_original>
// kernel: tpu_custom_call.1
$region0: #{tpu_custom_call.1}
  #allocation0 [shape = 'u32[]', space=smem, size = 0x4, offset = 0x4, fixed_abs, tag = 'smem constant byte address 0x4 - core index']
  #allocation1 [shape = 'u32[144,128]{1,0:T(1,128)}', space=vmem, size = 0x12000, scoped, tag = 'internal scratch']
  %s0 = inlined_call_operand.vmem [shape: f32[8,488], index: 0, kind: input, shape index: {}]
  %s1 = inlined_call_operand.vmem [shape: f32[1,244], index: 1, kind: input, shape index: {}]
  %s2 = inlined_call_operand.vmem [shape: f32[1,244], index: 2, kind: input, shape index: {}]
  %s3 = inlined_call_operand.vmem [shape: f32[244,64], index: 3, kind: input, shape index: {}]
  %s4 = inlined_call_operand.vmem [shape: f32[1,64], index: 4, kind: input, shape index: {}]
  %s5 = inlined_call_operand.hbm [shape: f32[8,128], index: 5, kind: output, shape index: {}]
  %s6 = sld [smem:[#allocation0]]
  $region30: #{tpu_custom_call.1} parent=0
    _
  %s8 = ssub.s32 1, %s6
  %s9 = scalar_select 0, %s8, %s6
  $region1: #{tpu_custom_call.1} parent=0
    #allocation2 [shape = 'u8[4096]{0}', space=vmem, size = 0x1000, scoped, tag = 'output window, operand 0, single buffered']
    #allocation3 [shape = 's32[1]{0}', space=sflag, size = 0x4, scoped, tag = 'scoped memory for tpu_custom_call.1']
    %10 = vsyncpa [#allocation3], 0
    // Predicated region
    $region2: #{tpu_custom_call.1} parent=1 // pred_check
      _
    $region3: #{tpu_custom_call.1} parent=1 // pred_check_branch
      %12 = sbr.rel (0) target = $region5
    $region4: #{tpu_custom_call.1} parent=1 // pred_region
      _
    $region5: #{tpu_custom_call.1} parent=1 // pred_fallthru
      _
    // Predicated region
    $region6: #{tpu_custom_call.1} parent=1 // pred_check
      _
    $region7: #{tpu_custom_call.1} parent=1 // pred_check_branch
      %14 = sbr.rel (0) target = $region9
    $region8: #{tpu_custom_call.1} parent=1 // pred_region
      _
    $region9: #{tpu_custom_call.1} parent=1 // pred_fallthru
      _
    // Predicated region
    $region10: #{tpu_custom_call.1} parent=1 // pred_check
      _
    $region11: #{tpu_custom_call.1} parent=1 // pred_check_branch
      %16 = sbr.rel (0) target = $region13
    $region12: #{tpu_custom_call.1} parent=1 // pred_region
      _
    $region13: #{tpu_custom_call.1} parent=1 // pred_fallthru
      _
    // Predicated region
    $region14: #{tpu_custom_call.1} parent=1 // pred_check
      _
    $region15: #{tpu_custom_call.1} parent=1 // pred_check_branch
      %18 = sbr.rel (0) target = $region17
    $region16: #{tpu_custom_call.1} parent=1 // pred_region
      _
    $region17: #{tpu_custom_call.1} parent=1 // pred_fallthru
      _
    // Predicated region
    $region18: #{tpu_custom_call.1} parent=1 // pred_check
      _
    $region19: #{tpu_custom_call.1} parent=1 // pred_check_branch
      %20 = sbr.rel (0) target = $region21
    $region20: #{tpu_custom_call.1} parent=1 // pred_region
      _
    $region21: #{tpu_custom_call.1} parent=1 // pred_fallthru
      _
    %v21 = vld [vmem:[%s0] sm:$0xff]
    %v22 = vld [vmem:[%s0 + $0x8] sm:$0xff]
    %v23 = vld [vmem:[%s0 + $0x10] sm:$0xff]
    %v24 = vld [vmem:[%s0 + $0x18] sm:$0xff]
    %v25 = vld [vmem:[%s1] sm:$0x3]
    %v26 = vld [vmem:[%s2] sm:$0x3]
    %v27 = vld [vmem:[%s3] sm:$0xff]
    %v28 = vld [vmem:[%s3 + $0x8] sm:$0xff]
    %v29 = vld [vmem:[%s3 + $0x10] sm:$0xff]
    %v30 = vld [vmem:[%s3 + $0x18] sm:$0xff]
    %v31 = vld [vmem:[%s3 + $0x20] sm:$0xff]
    %v32 = vld [vmem:[%s3 + $0x28] sm:$0xff]
    %v33 = vld [vmem:[%s3 + $0x30] sm:$0xff]
    %v34 = vld [vmem:[%s3 + $0x38] sm:$0xff]
    %v35 = vld [vmem:[%s3 + $0x40] sm:$0xff]
    %v36 = vld [vmem:[%s3 + $0x48] sm:$0xff]
    %v37 = vld [vmem:[%s3 + $0x50] sm:$0xff]
    %v38 = vld [vmem:[%s3 + $0x58] sm:$0xff]
    %v39 = vld [vmem:[%s3 + $0x60] sm:$0xff]
    %v40 = vld [vmem:[%s3 + $0x68] sm:$0xff]
    %v41 = vld [vmem:[%s3 + $0x70] sm:$0xff]
    %v42 = vld [vmem:[%s3 + $0x78] sm:$0xff]
    %v43 = vld [vmem:[%s3 + $0x80] sm:$0xff]
    %v44 = vld [vmem:[%s3 + $0x88] sm:$0xff]
    %v45 = vld [vmem:[%s3 + $0x90] sm:$0xff]
    %v46 = vld [vmem:[%s3 + $0x98] sm:$0xff]
    %v47 = vld [vmem:[%s3 + $0xa0] sm:$0xff]
    %v48 = vld [vmem:[%s3 + $0xa8] sm:$0xff]
    %v49 = vld [vmem:[%s3 + $0xb0] sm:$0xff]
    %v50 = vld [vmem:[%s3 + $0xb8] sm:$0xff]
    %v51 = vld [vmem:[%s3 + $0xc0] sm:$0xff]
    %v52 = vld [vmem:[%s3 + $0xc8] sm:$0xff]
    %v53 = vld [vmem:[%s3 + $0xd0] sm:$0xff]
    %v54 = vld [vmem:[%s3 + $0xd8] sm:$0xff]
    %v55 = vld [vmem:[%s3 + $0xe0] sm:$0xff]
    %v56 = vld [vmem:[%s3 + $0xe8] sm:$0xff]
    %v57 = vld [vmem:[%s3 + $0xf0] sm:$0xf]
    %v58 = vld [vmem:[%s4] sm:$0x1]
    %vm59 = vcmask 949248
    %v60 = vsel %vm59, %v22, 0.0
    %v61 = vadd.f32 %v21, %v60
    %62 = vadd.xlane.f32.xlu0 %v61
    %v63 = vpop.xlane.xlu0 %62
    %v64 = vrcp.pop 244.0
    %v65 = vmul.f32 %v63, %v64
    %v66 = vsub.f32 %v21, %v65
    %v67 = vsub.f32 %v22, %v65
    %v68 = vmul.f32 %v66, %v66
    %v69 = vmul.f32 %v67, %v67
    %v70 = vsel %vm59, %v69, 0.0
    %v71 = vadd.f32 %v68, %v70
    %72 = vadd.xlane.f32.xlu0 %v71
    %v73 = vpop.xlane.xlu0 %72
    %v74 = vmul.f32 %v73, %v64
    %v75 = vadd.f32 %v74, 1e-05
    %v76 = vrsqrt.pop %v75
    %v77 = vmul.f32 %v66, %v76
    %v78 = vmul.f32 %v67, %v76
    %v80 = vlaneseq
    %v81 = vshrl.u32 %v80, 7
    %v82 = vsub.s32 0, %v81
    %v83 = vrot.slane %v25, %v82
    %v84 = vlaneseq
    %v85 = vshrl.u32 %v84, 7
    %v86 = vsub.s32 1, %v85
    %v87 = vrot.slane %v25, %v86
    %v90 = vmul.f32 %v77, %v83
    %v91 = vmul.f32 %v78, %v87
    %v93 = vlaneseq
    %v94 = vshrl.u32 %v93, 7
    %v95 = vsub.s32 0, %v94
    %v96 = vrot.slane %v26, %v95
    %v97 = vlaneseq
    %v98 = vshrl.u32 %v97, 7
    %v99 = vsub.s32 1, %v98
    %v100 = vrot.slane %v26, %v99
    %v103 = vadd.f32 %v90, %v96
    %v104 = vadd.f32 %v91, %v100
    %v106 = vlaneseq
    %v107 = vshrl.u32 %v106, 7
    %v108 = vsub.s32 0, %v107
    %v109 = vrot.slane %v58, %v108
    %v112 = vsel %vm59, %v104, 0
    %vm114 = vcmask 1043456
    %v116 = vsel %vm114, %v57, 0
    %118 = vmatprep.subr.mxu0 0.0
    %119 = vmatpush1.msra.mxu0 %v42
    %120 = vmatprep.subr.mxu0 0.0
    %121 = vmatpush1.msra.mxu0 %v41
    %122 = vmatprep.subr.mxu0 0.0
    %123 = vmatpush1.msra.mxu0 %v40
    %124 = vmatprep.subr.mxu0 0.0
    %125 = vmatpush1.msra.mxu0 %v39
    %126 = vmatprep.subr.mxu0 0.0
    %127 = vmatpush1.msra.mxu0 %v38
    %128 = vmatprep.subr.mxu0 0.0
    %129 = vmatpush1.msra.mxu0 %v37
    %130 = vmatprep.subr.mxu0 0.0
    %131 = vmatpush1.msra.mxu0 %v36
    %132 = vmatprep.subr.mxu0 0.0
    %133 = vmatpush1.msra.mxu0 %v35
    %134 = vmatprep.subr.mxu0 0.0
    %135 = vmatpush1.msra.mxu0 %v34
    %136 = vmatprep.subr.mxu0 0.0
    %137 = vmatpush1.msra.mxu0 %v33
    %138 = vmatprep.subr.mxu0 0.0
    %139 = vmatpush1.msra.mxu0 %v32
    %140 = vmatprep.subr.mxu0 0.0
    %141 = vmatpush1.msra.mxu0 %v31
    %142 = vmatprep.subr.mxu0 0.0
    %143 = vmatpush1.msra.mxu0 %v30
    %144 = vmatprep.subr.mxu0 0.0
    %145 = vmatpush1.msra.mxu0 %v29
    %146 = vmatprep.subr.mxu0 0.0
    %147 = vmatpush1.msra.mxu0 %v28
    %148 = vmatprep.subr.mxu0 0.0
    %149 = vmatpush1.msra.mxu0 %v27
    %150 = vmatprep.subr.mxu0 0.0
    %151 = vmatpush2.msra.mxu0 0.0
    %152 = vmatprep.subr.mxu0 0.0
    %153 = vmatpush2.msra.mxu0 %v116
    %154 = vmatprep.subr.mxu0 0.0
    %155 = vmatpush2.msra.mxu0 %v56
    %156 = vmatprep.subr.mxu0 0.0
    %157 = vmatpush2.msra.mxu0 %v55
    %158 = vmatprep.subr.mxu0 0.0
    %159 = vmatpush2.msra.mxu0 %v54
    %160 = vmatprep.subr.mxu0 0.0
    %161 = vmatpush2.msra.mxu0 %v53
    %162 = vmatprep.subr.mxu0 0.0
    %163 = vmatpush2.msra.mxu0 %v52
    %164 = vmatprep.subr.mxu0 0.0
    %165 = vmatpush2.msra.mxu0 %v51
    %166 = vmatprep.subr.mxu0 0.0
    %167 = vmatpush2.msra.mxu0 %v50
    %168 = vmatprep.subr.mxu0 0.0
    %169 = vmatpush2.msra.mxu0 %v49
    %170 = vmatprep.subr.mxu0 0.0
    %171 = vmatpush2.msra.mxu0 %v48
    %172 = vmatprep.subr.mxu0 0.0
    %173 = vmatpush2.msra.mxu0 %v47
    %174 = vmatprep.subr.mxu0 0.0
    %175 = vmatpush2.msra.mxu0 %v46
    %176 = vmatprep.subr.mxu0 0.0
    %177 = vmatpush2.msra.mxu0 %v45
    %178 = vmatprep.subr.mxu0 0.0
    %179 = vmatpush2.msra.mxu0 %v44
    %180 = vmatprep.subr.mxu0 0.0
    %181 = vmatpush2.msra.mxu0 %v43
    %182 = vmatprep.mubr.f32.mxu0 %v112
    %183 = vmatmul.mubr.f32.gmra.mxu0 %v103
    %v184 = vpop.f32.mrf.mxu0
    %v185 = vadd.f32 %v109, %v184
    %v186 = vpop.f32.mrf.mxu0
    %187 = vdwg.mxu0
    %v188 = vmax.f32 %v185, 0.0
    %192 = vrot.lane.b32.xlu0 %v22, 12
    %v193 = vpop.permute.xlu0 %192
    %194 = vrot.lane.b32.xlu0 %v23, 12
    %v195 = vpop.permute.xlu0 %194
    %196 = vrot.lane.b32.xlu0 %v24, 12
    %v197 = vpop.permute.xlu0 %196
    %vm198 = vcmask 97280
    %v199 = vsel %vm198, %v193, %v195
    %v200 = vsel %vm198, %v195, %v197
    %v203 = vsel %vm59, %v200, 0.0
    %v204 = vadd.f32 %v199, %v203
    %205 = vadd.xlane.f32.xlu0 %v204
    %v206 = vpop.xlane.xlu0 %205
    %v207 = vmul.f32 %v206, %v64
    %v208 = vsub.f32 %v22, %v207
    %v209 = vsub.f32 %v23, %v207
    %v210 = vsub.f32 %v24, %v207
    %v211 = vmul.f32 %v208, %v208
    %v212 = vmul.f32 %v209, %v209
    %v213 = vmul.f32 %v210, %v210
    %217 = vrot.lane.b32.xlu0 %v211, 12
    %v218 = vpop.permute.xlu0 %217
    %219 = vrot.lane.b32.xlu0 %v212, 12
    %v220 = vpop.permute.xlu0 %219
    %221 = vrot.lane.b32.xlu0 %v213, 12
    %v222 = vpop.permute.xlu0 %221
    %v223 = vsel %vm198, %v218, %v220
    %v224 = vsel %vm198, %v220, %v222
    %v227 = vsel %vm59, %v224, 0.0
    %v228 = vadd.f32 %v223, %v227
    %229 = vadd.xlane.f32.xlu0 %v228
    %v230 = vpop.xlane.xlu0 %229
    %v231 = vmul.f32 %v230, %v64
    %v232 = vadd.f32 %v231, 1e-05
    %v233 = vrsqrt.pop %v232
    %v234 = vmul.f32 %v208, %v233
    %v235 = vmul.f32 %v209, %v233
    %v236 = vmul.f32 %v210, %v233
    %237 = vrot.lane.b32.xlu0 %v83, 116
    %v238 = vpop.permute.xlu0 %237
    %239 = vrot.lane.b32.xlu0 %v87, 116
    %v240 = vpop.permute.xlu0 %239
    %v241 = vsel %vm59, %v238, %v240
    %v245 = vmul.f32 %v234, %v238
    %v246 = vmul.f32 %v235, %v241
    %v247 = vmul.f32 %v236, %v240
    %248 = vrot.lane.b32.xlu0 %v96, 116
    %v249 = vpop.permute.xlu0 %248
    %250 = vrot.lane.b32.xlu0 %v100, 116
    %v251 = vpop.permute.xlu0 %250
    %v252 = vsel %vm59, %v249, %v251
    %v256 = vadd.f32 %v245, %v249
    %v257 = vadd.f32 %v246, %v252
    %v258 = vadd.f32 %v247, %v251
    %262 = vrot.lane.b32.xlu0 %v256, 12
    %v263 = vpop.permute.xlu0 %262
    %264 = vrot.lane.b32.xlu0 %v257, 12
    %v265 = vpop.permute.xlu0 %264
    %266 = vrot.lane.b32.xlu0 %v258, 12
    %v267 = vpop.permute.xlu0 %266
    %v268 = vsel %vm198, %v263, %v265
    %v269 = vsel %vm198, %v265, %v267
    %v271 = vsel %vm59, %v269, 0
    %273 = vmatprep.subr.mxu0 0.0
    %274 = vmatpush1.msra.mxu0 %v42
    %275 = vmatprep.subr.mxu0 0.0
    %276 = vmatpush1.msra.mxu0 %v41
    %277 = vmatprep.subr.mxu0 0.0
    %278 = vmatpush1.msra.mxu0 %v40
    %279 = vmatprep.subr.mxu0 0.0
    %280 = vmatpush1.msra.mxu0 %v39
    %281 = vmatprep.subr.mxu0 0.0
    %282 = vmatpush1.msra.mxu0 %v38
    %283 = vmatprep.subr.mxu0 0.0
    %284 = vmatpush1.msra.mxu0 %v37
    %285 = vmatprep.subr.mxu0 0.0
    %286 = vmatpush1.msra.mxu0 %v36
    %287 = vmatprep.subr.mxu0 0.0
    %288 = vmatpush1.msra.mxu0 %v35
    %289 = vmatprep.subr.mxu0 0.0
    %290 = vmatpush1.msra.mxu0 %v34
    %291 = vmatprep.subr.mxu0 0.0
    %292 = vmatpush1.msra.mxu0 %v33
    %293 = vmatprep.subr.mxu0 0.0
    %294 = vmatpush1.msra.mxu0 %v32
    %295 = vmatprep.subr.mxu0 0.0
    %296 = vmatpush1.msra.mxu0 %v31
    %297 = vmatprep.subr.mxu0 0.0
    %298 = vmatpush1.msra.mxu0 %v30
    %299 = vmatprep.subr.mxu0 0.0
    %300 = vmatpush1.msra.mxu0 %v29
    %301 = vmatprep.subr.mxu0 0.0
    %302 = vmatpush1.msra.mxu0 %v28
    %303 = vmatprep.subr.mxu0 0.0
    %304 = vmatpush1.msra.mxu0 %v27
    %305 = vmatprep.subr.mxu0 0.0
    %306 = vmatpush2.msra.mxu0 0.0
    %307 = vmatprep.subr.mxu0 0.0
    %308 = vmatpush2.msra.mxu0 %v116
    %309 = vmatprep.subr.mxu0 0.0
    %310 = vmatpush2.msra.mxu0 %v56
    %311 = vmatprep.subr.mxu0 0.0
    %312 = vmatpush2.msra.mxu0 %v55
    %313 = vmatprep.subr.mxu0 0.0
    %314 = vmatpush2.msra.mxu0 %v54
    %315 = vmatprep.subr.mxu0 0.0
    %316 = vmatpush2.msra.mxu0 %v53
    %317 = vmatprep.subr.mxu0 0.0
    %318 = vmatpush2.msra.mxu0 %v52
    %319 = vmatprep.subr.mxu0 0.0
    %320 = vmatpush2.msra.mxu0 %v51
    %321 = vmatprep.subr.mxu0 0.0
    %322 = vmatpush2.msra.mxu0 %v50
    %323 = vmatprep.subr.mxu0 0.0
    %324 = vmatpush2.msra.mxu0 %v49
    %325 = vmatprep.subr.mxu0 0.0
    %326 = vmatpush2.msra.mxu0 %v48
    %327 = vmatprep.subr.mxu0 0.0
    %328 = vmatpush2.msra.mxu0 %v47
    %329 = vmatprep.subr.mxu0 0.0
    %330 = vmatpush2.msra.mxu0 %v46
    %331 = vmatprep.subr.mxu0 0.0
    %332 = vmatpush2.msra.mxu0 %v45
    %333 = vmatprep.subr.mxu0 0.0
    %334 = vmatpush2.msra.mxu0 %v44
    %335 = vmatprep.subr.mxu0 0.0
    %336 = vmatpush2.msra.mxu0 %v43
    %337 = vmatprep.mubr.f32.mxu0 %v271
    %338 = vmatmul.mubr.f32.gmra.mxu0 %v268
    %v339 = vpop.f32.mrf.mxu0
    %v340 = vadd.f32 %v109, %v339
    %v341 = vpop.f32.mrf.mxu0
    %342 = vdwg.mxu0
    %v343 = vmax.f32 %v340, 0.0
    %345 = vrot.lane.b32.xlu0 %v343, 64
    %v346 = vpop.permute.xlu0 %345
    %vm348 = vcmask 523264
    %v349 = vsel %vm348, %v188, %v346
    %350 = vst [vmem:[#allocation2] sm:$0xff] %v349
    // Predicated region
    $region22: #{tpu_custom_call.1} parent=1 // pred_check
      _
    $region23: #{tpu_custom_call.1} parent=1 // pred_check_branch
      %352 = sbr.rel (0) target = $region25
    $region24: #{tpu_custom_call.1} parent=1 // pred_region
      %s354 = ssub.s32 128, 128
      %355 = vsyncadd [#allocation3], %s354
      %s357 = sshll.u32 [#allocation2], 4
      %s358 = int_to_ptr.vmem [resolvable:$true] %s357
      %360 = dma.vmem_to_hbm [thread:$0]  %s358, 128, %s5, [#allocation3]
    $region25: #{tpu_custom_call.1} parent=1 // pred_fallthru
      _
    // Predicated region
    $region26: #{tpu_custom_call.1} parent=1 // pred_check
      _
    $region27: #{tpu_custom_call.1} parent=1 // pred_check_branch
      %362 = sbr.rel (0) target = $region29
    $region28: #{tpu_custom_call.1} parent=1 // pred_region
      %363 = dma.done [#allocation3], 128
    $region29: #{tpu_custom_call.1} parent=1 // pred_fallthru
      _
    %364 = vsyncpa [#allocation3], 1

</llo_original>
